<compile_context>
chip_gen: v7x
topology: tpu7x:2x2x1
jax: 0.10.0
libtpu: 0.0.40
codegen_flags: <defaults>
</compile_context>

<pallas_src>
import functools

import jax
import jax.numpy as jnp
from jax.experimental import pallas as pl
from jax.experimental.pallas import tpu as pltpu


def _bce_loss_kernel(pos_ref, neg_ref, out_ref):
    i = pl.program_id(0)

    # Positive term: pos block is grid-invariant (resident), compute it once
    # and use it to initialize the accumulator.
    @pl.when(i == 0)
    def _init():
        pos = pos_ref[...].astype(jnp.float32)                        # (1, B) lane-dense
        # -logsigmoid(x) == softplus(-x); stable: max(x,0) + log1p(exp(-|x|))
        sp_pos = jnp.maximum(-pos, 0.0) + jnp.log1p(jnp.exp(-jnp.abs(pos)))
        out_ref[0, 0] = jnp.sum(sp_pos)

    # Negative term for this batch tile (one exp + one log1p per element).
    neg = neg_ref[...].astype(jnp.float32)                            # (TB, N)
    sp_neg = jnp.maximum(neg, 0.0) + jnp.log1p(jnp.exp(-jnp.abs(neg)))
    # softmax over ones == uniform 1/N.  N is NOT tiled, so the block width
    # is the global N and this stays correct for every grid step.
    inv_n = 1.0 / neg.shape[-1]
    out_ref[0, 0] = out_ref[0, 0] + jnp.sum(sp_neg) * inv_n


def _pick_block_rows(batch, n_neg, itemsize, target_bytes):
    """Largest power-of-two multiple of 8 that divides `batch` while keeping a
    (rows, n_neg) tile near `target_bytes`, so the pipeline gets several steps
    to overlap DMA with the VPU/EUP work."""
    if batch % 8 != 0:
        return batch                         # tiny / odd batch: one full block
    target_rows = max(8, target_bytes // max(1, n_neg * itemsize))
    rows = 8
    while rows * 2 <= batch and batch % (rows * 2) == 0 and rows * 2 <= target_rows:
        rows *= 2
    return rows


@functools.partial(jax.jit, static_argnames=("block_bytes",))
def binary_cross_entropy_loss(label, pos_score, log_pos_prob, neg_score,
                              log_neg_prob, *, block_bytes=4 * 1024 * 1024):
    """Mirrors BinaryCrossEntropyLoss(dns=False).forward. label / log-probs unused."""
    del label, log_pos_prob, log_neg_prob
    B, N = neg_score.shape

    # Native dtype in (no wrapper upcast -> half the HBM traffic for bf16);
    # pos presented lane-dense as (1, B).
    pos2d = pos_score.reshape(1, -1)

    tb = _pick_block_rows(B, N, neg_score.dtype.itemsize, block_bytes)
    grid = (B // tb,)

    out = pl.pallas_call(
        _bce_loss_kernel,
        out_shape=jax.ShapeDtypeStruct((1, 1), jnp.float32),
        grid=grid,
        in_specs=[
            pl.BlockSpec((1, B), lambda i: (0, 0)),                   # pos: resident
            pl.BlockSpec((tb, N), lambda i: (i, 0)),                  # neg: batch-tiled
        ],
        out_specs=pl.BlockSpec((1, 1), lambda i: (0, 0),
                               memory_space=pltpu.SMEM),              # scalar accumulator
        compiler_params=pltpu.CompilerParams(
            # Serial running-sum into one SMEM scalar -> reduction axis.
            dimension_semantics=("arbitrary",),
            # Explicit scoped-VMEM budget; blocks are ~2x4 MiB double-buffered,
            # comfortably inside 32 MiB on v5e/v6e and v7x's 64 MiB physical.
            vmem_limit_bytes=32 * 1024 * 1024,
        ),
    )(pos2d, neg_score)
    return out[0, 0]


def _reference(pos_score, neg_score):
    # pure-JAX reference of the PyTorch expression
    weight = jax.nn.softmax(jnp.ones_like(neg_score), axis=-1)
    return jnp.sum(-jax.nn.log_sigmoid(pos_score)
                   + jnp.sum(jax.nn.softplus(neg_score) * weight, axis=-1))


if __name__ == "__main__":
    key = jax.random.PRNGKey(0)
    k1, k2, k3, k4, k5 = jax.random.split(key, 5)

    B, N = 64, 128  # batch of positives, negatives per positive
    label = jax.random.bernoulli(k1, 0.5, (B,)).astype(jnp.float32)
    pos_score = jax.random.normal(k2, (B,), dtype=jnp.float32)
    log_pos_prob = jax.random.normal(k3, (B,), dtype=jnp.float32)
    neg_score = jax.random.normal(k4, (B, N), dtype=jnp.float32)
    log_neg_prob = jax.random.normal(k5, (B, N), dtype=jnp.float32)

    # f32 path — use a tiny block_bytes so the multi-step accumulating grid is
    # exercised even at this small demo shape (tb=16 -> grid=(4,)).
    loss = binary_cross_entropy_loss(label, pos_score, log_pos_prob,
                                     neg_score, log_neg_prob,
                                     block_bytes=8 * 1024)
    loss = jax.block_until_ready(loss)
    ref = _reference(pos_score, neg_score)
    assert jnp.allclose(loss, ref, rtol=1e-5, atol=1e-4), (loss, ref)

    # bf16 path — native-dtype DMA, f32 math inside the kernel.
    pos_bf16 = pos_score.astype(jnp.bfloat16)
    neg_bf16 = neg_score.astype(jnp.bfloat16)
    loss_bf16 = binary_cross_entropy_loss(label, pos_bf16, log_pos_prob,
                                          neg_bf16, log_neg_prob)
    loss_bf16 = jax.block_until_ready(loss_bf16)
    ref_bf16 = _reference(pos_bf16.astype(jnp.float32),
                          neg_bf16.astype(jnp.float32))
    assert jnp.allclose(loss_bf16, ref_bf16, rtol=1e-3, atol=1e-3), (loss_bf16, ref_bf16)

    print("KERNEL_OK")
</pallas_src>

<mosaic_0001>
module attributes {stable_mosaic.version = 11 : i64} {
  func.func @_bce_loss_kernel(%arg0: i32, %arg1: memref<1x64xf32, #tpu.memory_space<vmem>>, %arg2: memref<16x128xf32, #tpu.memory_space<vmem>>, %arg3: memref<1x1xf32, #tpu.memory_space<smem>>) attributes {dimension_semantics = [#tpu.dimension_semantics<arbitrary>], iteration_bounds = array<i64: 4>, scalar_prefetch = 0 : i64, scratch_operands = 0 : i64, tpu.core_type = #tpu.core_type<tc>, window_params = [{pipeline_mode = #tpu.pipeline_mode<synchronous>, transform_indices = @transform_0, window_bounds = array<i64: 1, 64>}, {transform_indices = @transform_1, window_bounds = array<i64: 16, 128>}, {transform_indices = @transform_2, window_bounds = array<i64: 1, 1>}]} {
    %c0_i32 = arith.constant 0 : i32
    %0 = arith.cmpi eq, %arg0, %c0_i32 : i32
    %1 = arith.extui %0 : i1 to i32
    %c0_i32_0 = arith.constant 0 : i32
    %2 = arith.cmpi ne, %1, %c0_i32_0 : i32
    scf.if %2 {
      %c0_9 = arith.constant 0 : index
      %c0_10 = arith.constant 0 : index
      %20 = vector.load %arg1[%c0_9, %c0_10] : memref<1x64xf32, #tpu.memory_space<vmem>>, vector<1x64xf32>
      %cst_11 = arith.constant 0.000000e+00 : f32
      %21 = vector.broadcast %cst_11 : f32 to vector<1x64xf32>
      %22 = arith.subf %21, %20 : vector<1x64xf32>
      %cst_12 = arith.constant 0.000000e+00 : f32
      %23 = vector.broadcast %cst_12 : f32 to vector<1x64xf32>
      %24 = arith.maximumf %22, %23 : vector<1x64xf32>
      %25 = math.absf %20 : vector<1x64xf32>
      %cst_13 = arith.constant 0.000000e+00 : f32
      %26 = vector.broadcast %cst_13 : f32 to vector<1x64xf32>
      %27 = arith.subf %26, %25 : vector<1x64xf32>
      %28 = math.exp %27 : vector<1x64xf32>
      %29 = math.log1p %28 : vector<1x64xf32>
      %30 = arith.addf %24, %29 : vector<1x64xf32>
      %31 = vector.shape_cast %30 : vector<1x64xf32> to vector<1x1x64xf32>
      %cst_14 = arith.constant dense<0.000000e+00> : vector<1xf32>
      %32 = vector.multi_reduction <add>, %31, %cst_14 [1, 2] : vector<1x1x64xf32> to vector<1xf32>
      %33 = vector.shape_cast %32 : vector<1xf32> to vector<1x1x1xf32>
      %34 = vector.extract %33[0, 0, 0] : f32 from vector<1x1x1xf32>
      %c0_15 = arith.constant 0 : index
      %c0_16 = arith.constant 0 : index
      %35 = memref.load %arg3[%c0_15, %c0_16] : memref<1x1xf32, #tpu.memory_space<smem>>
      memref.store %34, %arg3[%c0_15, %c0_16] : memref<1x1xf32, #tpu.memory_space<smem>>
    } else {
    }
    %c0 = arith.constant 0 : index
    %c0_1 = arith.constant 0 : index
    %3 = vector.load %arg2[%c0, %c0_1] : memref<16x128xf32, #tpu.memory_space<vmem>>, vector<16x128xf32>
    %cst = arith.constant 0.000000e+00 : f32
    %4 = vector.broadcast %cst : f32 to vector<16x128xf32>
    %5 = arith.maximumf %3, %4 : vector<16x128xf32>
    %6 = math.absf %3 : vector<16x128xf32>
    %cst_2 = arith.constant 0.000000e+00 : f32
    %7 = vector.broadcast %cst_2 : f32 to vector<16x128xf32>
    %8 = arith.subf %7, %6 : vector<16x128xf32>
    %9 = math.exp %8 : vector<16x128xf32>
    %10 = math.log1p %9 : vector<16x128xf32>
    %11 = arith.addf %5, %10 : vector<16x128xf32>
    %c0_3 = arith.constant 0 : index
    %c0_4 = arith.constant 0 : index
    %12 = memref.load %arg3[%c0_3, %c0_4] : memref<1x1xf32, #tpu.memory_space<smem>>
    %13 = vector.shape_cast %11 : vector<16x128xf32> to vector<1x16x128xf32>
    %cst_5 = arith.constant dense<0.000000e+00> : vector<1xf32>
    %14 = vector.multi_reduction <add>, %13, %cst_5 [1, 2] : vector<1x16x128xf32> to vector<1xf32>
    %15 = vector.shape_cast %14 : vector<1xf32> to vector<1x1x1xf32>
    %16 = vector.extract %15[0, 0, 0] : f32 from vector<1x1x1xf32>
    %cst_6 = arith.constant 7.812500e-03 : f32
    %17 = arith.mulf %16, %cst_6 : f32
    %18 = arith.addf %12, %17 : f32
    %c0_7 = arith.constant 0 : index
    %c0_8 = arith.constant 0 : index
    %19 = memref.load %arg3[%c0_7, %c0_8] : memref<1x1xf32, #tpu.memory_space<smem>>
    memref.store %18, %arg3[%c0_7, %c0_8] : memref<1x1xf32, #tpu.memory_space<smem>>
    return
  }
  func.func @transform_0(%arg0: i32) -> (i32, i32) {
    %c0_i32 = arith.constant 0 : i32
    %c0_i32_0 = arith.constant 0 : i32
    %c0_i32_1 = arith.constant 0 : i32
    return %c0_i32, %c0_i32_0 : i32, i32
  }
  func.func @transform_1(%arg0: i32) -> (i32, i32) {
    %c0_i32 = arith.constant 0 : i32
    %c0_i32_0 = arith.constant 0 : i32
    return %arg0, %c0_i32 : i32, i32
  }
  func.func @transform_2(%arg0: i32) -> (i32, i32) {
    %c0_i32 = arith.constant 0 : i32
    %c0_i32_0 = arith.constant 0 : i32
    %c0_i32_1 = arith.constant 0 : i32
    return %c0_i32, %c0_i32_0 : i32, i32
  }
}

</mosaic_0001>

<llo_original>
// kernel: binary_cross_entropy_loss.1
$region0: #{binary_cross_entropy_loss.1}
  #allocation0 [shape = 'u32[]', space=smem, size = 0x4, offset = 0x4, fixed_abs, tag = 'smem constant byte address 0x4 - core index']
  #allocation1 [shape = 'u32[144,128]{1,0:T(1,128)}', space=vmem, size = 0x12000, scoped, tag = 'internal scratch']
  %s0 = inlined_call_operand.vmem [shape: f32[1,64], index: 0, kind: input, shape index: {}]
  %s1 = inlined_call_operand.hbm [shape: f32[64,128], index: 1, kind: input, shape index: {}]
  %s2 = inlined_call_operand.hbm [shape: f32[1,1], index: 2, kind: output, shape index: {}]
  %s3 = sld [smem:[#allocation0]]
  $region49: #{binary_cross_entropy_loss.1} parent=0
    _
  %s5 = ssub.s32 1, %s3
  %s6 = scalar_select 0, %s5, %s3
  $region1: #{binary_cross_entropy_loss.1} parent=0
    #allocation2 [shape = 'u8[16384]{0}', space=vmem, size = 0x4000, scoped, tag = 'input window, operand 1']
    #allocation3 [shape = 's32[2]{0}', space=sflag, size = 0x8, scoped, tag = 'scoped memory for binary_cross_entropy_loss.1']
    #allocation4 [shape = 's32[2]{0}', space=sflag, size = 0x8, scoped, tag = 'scoped memory for binary_cross_entropy_loss.1']
    #allocation5 [shape = 'u8[512]{0}', space=smem, size = 0x200, scoped, tag = 'output window, operand 0, single buffered']
    %7 = vsyncpa [#allocation3], 0
    %s8 = scalar_lea.sflag [#allocation3], 1
    %9 = vsyncpa %s8, 0
    %10 = vsyncpa [#allocation4], 0
    loop: start=0, step=1, limit=6
    $region2: #{binary_cross_entropy_loss.1} parent=1 // loop_pre_header
      _
    $region3: #{binary_cross_entropy_loss.1} parent=1 // loop_header
      %s12 = sphi 0, %s16
      %p13 = scmp.ge.s32.totalorder %s12, 6
      %s20 = sphi 0, %s20
      %s22 = sphi 0, %s20
      %s23 = sphi 0, %s22
      %s37 = sphi 0, %s23
      %s43 = sphi 0, %s45
      %s46 = sphi 0, %s43
      %s47 = sphi 0, %s46
      %s63 = sphi 0, %s47
      %s67 = sphi 0, %s67
      %s69 = sphi 0, %s67
      %s70 = sphi 0, %s69
      %s84 = sphi 0, %s70
    $region4: #{binary_cross_entropy_loss.1} parent=1 // loop_header_branch
      %15 = sbr.rel (%p13) target = $region8
    $region5: #{binary_cross_entropy_loss.1} parent=1 // loop_body
      %s17 = ssub.s32 %s12, 1
      %s18 = ssub.s32 %s12, 2
      %s19 = sadd.s32 %s12, 1
      %s21 = sadd.s32 %s20, 1
      %p24 = scmp.eq.s32.totalorder %s12, 3
      %p25 = scmp.ne.s32.totalorder %s20, %s22
      %p26 = scmp.eq.s32.totalorder %s12, 0
      %p27 = por %p25, %p26
      %p28 = scmp.ne.s32.totalorder %s20, %s22
      %p29 = scmp.eq.s32.totalorder %s17, 3
      %p30 = por %p28, %p29
      %p31 = scmp.ne.s32.totalorder %s22, %s23
      %p32 = scmp.eq.s32.totalorder %s17, 0
      %p33 = por %p31, %p32
      %p34 = scmp.ne.s32.totalorder %s22, %s23
      %p35 = scmp.eq.s32.totalorder %s18, 3
      %p36 = por %p34, %p35
      %p38 = scmp.ne.s32.totalorder %s23, %s37
      %p39 = scmp.eq.s32.totalorder %s18, 0
      %p40 = por %p38, %p39
      %s41 = ssub.s32 %s12, %s19
      %p42 = scmp.eq.s32.totalorder %s41, 0
      %s44 = sadd.s32 %s43, 1
      %s45 = scalar_select %p42, %s43, %s44
      %p48 = pneg %p42
      %p49 = scmp.eq.s32.totalorder %s12, 3
      %p50 = por %p48, %p49
      %p51 = scmp.ne.s32.totalorder %s43, %s46
      %p52 = scmp.eq.s32.totalorder %s12, 0
      %p53 = por %p51, %p52
      %p54 = scmp.ne.s32.totalorder %s43, %s46
      %p55 = scmp.eq.s32.totalorder %s17, 3
      %p56 = por %p54, %p55
      %p57 = scmp.ne.s32.totalorder %s46, %s47
      %p58 = scmp.eq.s32.totalorder %s17, 0
      %p59 = por %p57, %p58
      %p60 = scmp.ne.s32.totalorder %s46, %s47
      %p61 = scmp.eq.s32.totalorder %s18, 3
      %p62 = por %p60, %p61
      %p64 = scmp.ne.s32.totalorder %s47, %s63
      %p65 = scmp.eq.s32.totalorder %s18, 0
      %p66 = por %p64, %p65
      %s68 = sadd.s32 %s67, 1
      %p71 = scmp.eq.s32.totalorder %s12, 3
      %p72 = scmp.ne.s32.totalorder %s67, %s69
      %p73 = scmp.eq.s32.totalorder %s12, 0
      %p74 = por %p72, %p73
      %p75 = scmp.ne.s32.totalorder %s67, %s69
      %p76 = scmp.eq.s32.totalorder %s17, 3
      %p77 = por %p75, %p76
      %p78 = scmp.ne.s32.totalorder %s69, %s70
      %p79 = scmp.eq.s32.totalorder %s17, 0
      %p80 = por %p78, %p79
      %p81 = scmp.ne.s32.totalorder %s69, %s70
      %p82 = scmp.eq.s32.totalorder %s18, 3
      %p83 = por %p81, %p82
      %p85 = scmp.ne.s32.totalorder %s70, %s84
      %p86 = scmp.eq.s32.totalorder %s18, 0
      %p87 = por %p85, %p86
      %p88 = scmp.le.s32.totalorder 1, %s12
      %p89 = scmp.lt.s32.totalorder %s12, 5
      %p90 = pnand %p88, %p89
      %p91 = pneg %p90
      // Predicated region
      $region9: #{binary_cross_entropy_loss.1} parent=5 // pred_check
        _
      $region10: #{binary_cross_entropy_loss.1} parent=5 // pred_check_branch
        %93 = sbr.rel (%p90) target = $region12
      $region11: #{binary_cross_entropy_loss.1} parent=5 // pred_region
        %s94 = ssub.s32 %s12, 1
        // Predicated region
        $region13: #{binary_cross_entropy_loss.1} parent=11 // pred_check
          %p95 = pneg %p33
        $region14: #{binary_cross_entropy_loss.1} parent=11 // pred_check_branch
          %97 = sbr.rel (%p95) target = $region16
        $region15: #{binary_cross_entropy_loss.1} parent=11 // pred_region
          _
        $region16: #{binary_cross_entropy_loss.1} parent=11 // pred_fallthru
          _
      $region12: #{binary_cross_entropy_loss.1} parent=5 // pred_fallthru
        _
      %p98 = scmp.lt.s32.totalorder %s12, 4
      // Predicated region
      $region17: #{binary_cross_entropy_loss.1} parent=5 // pred_check
        %p99 = pneg %p98
      $region18: #{binary_cross_entropy_loss.1} parent=5 // pred_check_branch
        %101 = sbr.rel (%p99) target = $region20
      $region19: #{binary_cross_entropy_loss.1} parent=5 // pred_region
        // Predicated region
        $region21: #{binary_cross_entropy_loss.1} parent=19 // pred_check
          %p102 = pneg %p53
        $region22: #{binary_cross_entropy_loss.1} parent=19 // pred_check_branch
          %104 = sbr.rel (%p102) target = $region24
        $region23: #{binary_cross_entropy_loss.1} parent=19 // pred_region
          %s105 = sand.u32 %s43, 1
          %s106 = scalar_lea.sflag [#allocation3], %s105
          %s107 = sand.u32 %s43, 1
          %s108 = smul.addr %s107, 16
          %s109 = scalar_lea.vmem [#allocation2], %s108
          %s110 = smul.u32 2, %s12
          %s112 = ssub.s32 256, 256
          %113 = vsyncadd %s106, %s112
          %s114 = smul.addr %s110, 128
          %s115 = scalar_lea.hbm %s1, %s114
          %s116 = sshll.u32 %s109, 4
          %s117 = int_to_ptr.vmem [resolvable:$true] %s116
          %122 = dma.hbm_to_vmem [thread:$0]  %s115, 256, %s117, %s106, 128, 128, 8
        $region24: #{binary_cross_entropy_loss.1} parent=19 // pred_fallthru
          _
      $region20: #{binary_cross_entropy_loss.1} parent=5 // pred_fallthru
        _
      %p123 = scmp.le.s32.totalorder 1, %s12
      %p124 = scmp.lt.s32.totalorder %s12, 5
      %p125 = pnand %p123, %p124
      %p126 = pneg %p125
      // Predicated region
      $region25: #{binary_cross_entropy_loss.1} parent=5 // pred_check
        _
      $region26: #{binary_cross_entropy_loss.1} parent=5 // pred_check_branch
        %128 = sbr.rel (%p125) target = $region28
      $region27: #{binary_cross_entropy_loss.1} parent=5 // pred_region
        %s129 = ssub.s32 %s12, 1
        %s130 = sand.u32 %s46, 1
        %s131 = scalar_lea.sflag [#allocation3], %s130
        %s132 = sand.u32 %s46, 1
        %s133 = smul.addr %s132, 16
        %s134 = scalar_lea.vmem [#allocation2], %s133
        // Predicated region
        $region29: #{binary_cross_entropy_loss.1} parent=27 // pred_check
          %p135 = pneg %p59
        $region30: #{binary_cross_entropy_loss.1} parent=27 // pred_check_branch
          %137 = sbr.rel (%p135) target = $region32
        $region31: #{binary_cross_entropy_loss.1} parent=27 // pred_region
          %138 = dma.done %s131, 256
        $region32: #{binary_cross_entropy_loss.1} parent=27 // pred_fallthru
          _
        %p139 = pneg %p33
        %p140 = pneg %p30
        %s141 = sand.u32 %s46, 1
        %s142 = scalar_lea.sflag [#allocation3], %s141
        %s143 = sand.u32 %s46, 1
        %s144 = smul.addr %s143, 16
        %s145 = scalar_lea.vmem [#allocation2], %s144
        %p146 = pneg %p59
        %p147 = pneg %p56
        %p148 = pneg %p80
        %p149 = pneg %p77
        %s150 = smul.u32 2, %s17
        %p151 = scmp.eq.s32.totalorder %s17, 0
        // Predicated region
        $region33: #{binary_cross_entropy_loss.1} parent=27 // pred_check
          %p152 = pneg %p151
        $region34: #{binary_cross_entropy_loss.1} parent=27 // pred_check_branch
          %154 = sbr.rel (%p152) target = $region36
        $region35: #{binary_cross_entropy_loss.1} parent=27 // pred_region
          %v155 = vld [vmem:[%s0] sm:$0x1]
          %v156 = vsub.f32 0.0, %v155
          %v157 = vmax.f32 %v156, 0.0
          %v158 = vand.u32 2147483647, %v155
          %v159 = vsub.f32 0.0, %v158
          %v160 = vmul.f32 %v159, 1.442695
          %v161 = vpow.pop %v160
          %v162 = vadd.f32 %v161, 1.0
          %v163 = vlog2.pop %v162
          %v164 = vmul.f32 %v163, 0.6931472
          %v165 = vmul.f32 -0.5, %v161
          %v166 = vadd.f32 %v165, 1.0
          %v167 = vmul.f32 %v166, %v161
          %v168 = vand.u32 2147483647, %v161
          %vm169 = vcmp.lt.f32.partialorder %v168, 0.0004427343
          %v170 = vsel %vm169, %v167, %v164
          %v171 = vadd.f32 %v157, %v170
          %vm172 = vcmask 516096
          %v173 = vsel %vm172, %v171, 0.0
          %174 = vadd.xlane.f32.xlu0 %v173
          %v175 = vpop.xlane.xlu0 %174
          %v176 = vrot.slane %v175, 4
          %v177 = vadd.f32 %v175, %v176
          %v178 = vrot.slane %v177, 2
          %v179 = vadd.f32 %v177, %v178
          %v180 = vrot.slane %v179, 1
          %v181 = vadd.f32 %v179, %v180
          %s182 = vtos %v181
          %s183 = scalar_lea.smem [#allocation5], 0
          %184 = sst [smem:[%s183]] %s182
        $region36: #{binary_cross_entropy_loss.1} parent=27 // pred_fallthru
          _
        %v185 = vld [vmem:[%s134] sm:$0xff]
        %v186 = vld [vmem:[%s134 + $0x8] sm:$0xff]
        %v187 = vmax.f32 %v185, 0.0
        %v188 = vmax.f32 %v186, 0.0
        %v189 = vand.u32 2147483647, %v185
        %v190 = vand.u32 2147483647, %v186
        %v191 = vsub.f32 0.0, %v189
        %v192 = vsub.f32 0.0, %v190
        %v193 = vmul.f32 %v191, 1.442695
        %v194 = vpow.pop %v193
        %v195 = vmul.f32 %v192, 1.442695
        %v196 = vpow.pop %v195
        %v197 = vadd.f32 %v194, 1.0
        %v198 = vlog2.pop %v197
        %v199 = vmul.f32 %v198, 0.6931472
        %v200 = vmul.f32 -0.5, %v194
        %v201 = vadd.f32 %v200, 1.0
        %v202 = vmul.f32 %v201, %v194
        %v203 = vand.u32 2147483647, %v194
        %vm204 = vcmp.lt.f32.partialorder %v203, 0.0004427343
        %v205 = vsel %vm204, %v202, %v199
        %v206 = vadd.f32 %v196, 1.0
        %v207 = vlog2.pop %v206
        %v208 = vmul.f32 %v207, 0.6931472
        %v209 = vmul.f32 -0.5, %v196
        %v210 = vadd.f32 %v209, 1.0
        %v211 = vmul.f32 %v210, %v196
        %v212 = vand.u32 2147483647, %v196
        %vm213 = vcmp.lt.f32.partialorder %v212, 0.0004427343
        %v214 = vsel %vm213, %v211, %v208
        %v215 = vadd.f32 %v187, %v205
        %v216 = vadd.f32 %v188, %v214
        %s217 = sld [smem:[#allocation5]]
        %v218 = vadd.f32 %v215, %v216
        %219 = vadd.xlane.f32.xlu0 %v218
        %v220 = vpop.xlane.xlu0 %219
        %v221 = vrot.slane %v220, 4
        %v222 = vadd.f32 %v220, %v221
        %v223 = vrot.slane %v222, 2
        %v224 = vadd.f32 %v222, %v223
        %v225 = vrot.slane %v224, 1
        %v226 = vadd.f32 %v224, %v225
        %s227 = vtos %v226
        %s228 = smul.f32 %s227, 0.0078125
        %s229 = sadd.f32 %s217, %s228
        %s230 = scalar_lea.smem [#allocation5], 0
        %231 = sst [smem:[%s230]] %s229
        // Predicated region
        $region37: #{binary_cross_entropy_loss.1} parent=27 // pred_check
          %p232 = pneg %p77
        $region38: #{binary_cross_entropy_loss.1} parent=27 // pred_check_branch
          %234 = sbr.rel (%p232) target = $region40
        $region39: #{binary_cross_entropy_loss.1} parent=27 // pred_region
          %s236 = ssub.s32 16, 16
          %237 = vsyncadd [#allocation4], %s236
          %240 = dma.smem_to_hbm [#allocation5], 16, %s2, [#allocation4]
        $region40: #{binary_cross_entropy_loss.1} parent=27 // pred_fallthru
          _
        // Predicated region
        $region41: #{binary_cross_entropy_loss.1} parent=27 // pred_check
          %p241 = pneg %p77
        $region42: #{binary_cross_entropy_loss.1} parent=27 // pred_check_branch
          %243 = sbr.rel (%p241) target = $region44
        $region43: #{binary_cross_entropy_loss.1} parent=27 // pred_region
          %244 = dma.done [#allocation4], 16
        $region44: #{binary_cross_entropy_loss.1} parent=27 // pred_fallthru
          _
        %245 = sfence
      $region28: #{binary_cross_entropy_loss.1} parent=5 // pred_fallthru
        _
      %p246 = scmp.le.s32.totalorder 2, %s12
      // Predicated region
      $region45: #{binary_cross_entropy_loss.1} parent=5 // pred_check
        %p247 = pneg %p246
      $region46: #{binary_cross_entropy_loss.1} parent=5 // pred_check_branch
        %249 = sbr.rel (%p247) target = $region48
      $region47: #{binary_cross_entropy_loss.1} parent=5 // pred_region
        %s250 = ssub.s32 %s12, 2
      $region48: #{binary_cross_entropy_loss.1} parent=5 // pred_fallthru
        _
    $region6: #{binary_cross_entropy_loss.1} parent=1 // loop_footer
      %s16 = sadd.s32 1, %s12
    $region7: #{binary_cross_entropy_loss.1} parent=1 // loop_footer_branch
      %11 = sbr.rel target = $region3
    $region8: #{binary_cross_entropy_loss.1} parent=1 // loop_exit
      _
    %251 = vsyncpa [#allocation3], 1
    %s252 = scalar_lea.sflag [#allocation3], 1
    %253 = vsyncpa %s252, 1
    %254 = vsyncpa [#allocation4], 1
    %s255 = scalar_lea.sflag [#allocation4], 1
    %256 = vsyncpa %s255, 1

</llo_original>
